<compile_context>
chip_gen: v7x
topology: tpu7x:2x2x1
jax: 0.10.0
libtpu: 0.0.40
codegen_flags: <defaults>
</compile_context>

<pallas_src>
import math

import jax
import jax.numpy as jnp
from jax.experimental import pallas as pl
from jax.experimental.pallas import tpu as pltpu


def _round_up(x: int, m: int) -> int:
    return ((x + m - 1) // m) * m


def _kernel_direct(x_ref, wt_ref, b_ref, o_ref):
    # f32 output: accumulate straight into the VMEM-resident output block.
    k = pl.program_id(2)

    @pl.when(k == 0)
    def _():
        o_ref[...] = jnp.zeros_like(o_ref)

    o_ref[...] += jnp.dot(x_ref[...], wt_ref[...],
                          preferred_element_type=jnp.float32)

    @pl.when(k == pl.num_programs(2) - 1)
    def _():
        o_ref[...] += b_ref[...]


def _kernel_acc(x_ref, wt_ref, b_ref, o_ref, acc_ref):
    # Non-f32 output (e.g. bf16): f32 scratch accumulator, cast in epilogue.
    k = pl.program_id(2)

    @pl.when(k == 0)
    def _():
        acc_ref[...] = jnp.zeros_like(acc_ref)

    acc_ref[...] += jnp.dot(x_ref[...], wt_ref[...],
                            preferred_element_type=jnp.float32)

    @pl.when(k == pl.num_programs(2) - 1)
    def _():
        o_ref[...] = (acc_ref[...] + b_ref[...]).astype(o_ref.dtype)


def prepare_for_mha(x, weight, bias, heads, d_k, *, tm=512, tn=512, tk=1024):
    """x: [N, S, D]; weight: [H*E, D] (PyTorch layout); bias: [H*E] or None.

    Returns [N, S, H, E] in x.dtype (matmul accumulated in f32)."""
    N, S, D = x.shape
    HE = heads * d_k
    assert weight.shape == (HE, D)
    if bias is None:
        bias = jnp.zeros((HE,), dtype=jnp.float32)
    assert bias.shape == (HE,)

    M = N * S
    out_dtype = x.dtype

    x2d = x.reshape(M, D)                       # contiguous view, no copy
    wt = weight.T.astype(x.dtype)               # one-time [HE,D] -> [D,HE]
    b2d = bias.reshape(1, HE).astype(jnp.float32)

    # ---- tile selection (M / HE are never padded; edge blocks are masked) ----
    if M <= tm:
        tm = M                                  # full-extent block is legal
    else:
        tm = max(8, (tm // 8) * 8)
    if HE <= tn:
        tn = HE
    else:
        tn = max(128, (tn // 128) * 128)

    # K (contraction) axis must be tiled exactly: pick tk dividing D, else pad.
    if D <= tk:
        tk, Dp = D, D
    else:
        tk_cap = max(128, (tk // 128) * 128)
        tk_sel = 0
        for t in range(tk_cap, 127, -128):
            if D % t == 0:
                tk_sel = t
                break
        if tk_sel:
            tk, Dp = tk_sel, D
        else:
            tk = tk_cap
            Dp = _round_up(D, tk)

    if Dp != D:  # rare fallback: zero-pad the contraction dim only
        x2d = jnp.pad(x2d, ((0, 0), (0, Dp - D)))
        wt = jnp.pad(wt, ((0, Dp - D), (0, 0)))

    # v7x megacore balance: avoid a 1x1 parallel grid when tn can be split.
    if pl.cdiv(M, tm) == 1 and pl.cdiv(HE, tn) == 1 and tn % 256 == 0:
        tn //= 2

    grid = (pl.cdiv(M, tm), pl.cdiv(HE, tn), Dp // tk)

    use_acc = out_dtype != jnp.float32
    kernel = _kernel_acc if use_acc else _kernel_direct
    scratch = [pltpu.VMEM((tm, tn), jnp.float32)] if use_acc else []

    xb = jnp.dtype(x.dtype).itemsize
    ob = jnp.dtype(out_dtype).itemsize
    vmem_bytes = (2 * tm * tk * xb + 2 * tk * tn * xb + 2 * tm * tn * ob
                  + 2 * tn * 4 + (tm * tn * 4 if use_acc else 0))
    # Raise the scoped-VMEM limit with headroom; cap at 64 MiB (v7x physical).
    vmem_limit = min(64 * 1024 * 1024,
                     max(32 * 1024 * 1024, int(vmem_bytes * 1.5)))

    cost = pl.CostEstimate(
        flops=2 * M * D * HE,
        transcendentals=0,
        bytes_accessed=M * D * xb + D * HE * xb + M * HE * ob + HE * 4)

    out2d = pl.pallas_call(
        kernel,
        out_shape=jax.ShapeDtypeStruct((M, HE), out_dtype),
        grid_spec=pltpu.PrefetchScalarGridSpec(
            num_scalar_prefetch=0,
            grid=grid,
            in_specs=[
                pl.BlockSpec((tm, tk), lambda i, j, k: (i, k)),   # x tile
                pl.BlockSpec((tk, tn), lambda i, j, k: (k, j)),   # w.T tile
                pl.BlockSpec((1, tn), lambda i, j, k: (0, j)),    # bias tile
            ],
            out_specs=pl.BlockSpec((tm, tn), lambda i, j, k: (i, j)),
            scratch_shapes=scratch,
        ),
        compiler_params=pltpu.CompilerParams(
            dimension_semantics=("parallel", "parallel", "arbitrary"),
            vmem_limit_bytes=vmem_limit),
        cost_estimate=cost,
    )(x2d, wt, b2d)

    # Lane-dense [M, HE] slab inside the kernel; cheap metadata reshape outside.
    return out2d.reshape(N, S, heads, d_k)


def _reference(x, weight, bias, heads, d_k):
    N, S, D = x.shape
    y = (x.astype(jnp.float32).reshape(-1, D)
         @ weight.astype(jnp.float32).T + bias.astype(jnp.float32))
    return y.reshape(N, S, heads, d_k)


def _make_inputs(key, N, S, d_model, heads, d_k, dtype):
    kx, kw, kb = jax.random.split(key, 3)
    x = jax.random.normal(kx, (N, S, d_model), dtype=jnp.float32).astype(dtype)
    bound = 1.0 / math.sqrt(d_model)       # nn.Linear default init range
    w = jax.random.uniform(kw, (heads * d_k, d_model), minval=-bound,
                           maxval=bound, dtype=jnp.float32).astype(dtype)
    b = jax.random.uniform(kb, (heads * d_k,), minval=-bound, maxval=bound,
                           dtype=jnp.float32)
    return x, w, b


if __name__ == "__main__":
    key = jax.random.PRNGKey(0)
    k1, k2, k3, k4 = jax.random.split(key, 4)

    # --- Test 1: small aligned-ish shapes matching the module's forward -----
    N, S, d_model, heads, d_k = 2, 8, 32, 4, 8
    x, w, b = _make_inputs(k1, N, S, d_model, heads, d_k, jnp.float32)
    out = jax.block_until_ready(prepare_for_mha(x, w, b, heads, d_k))
    ref = _reference(x, w, b, heads, d_k)
    assert out.shape == (N, S, heads, d_k)
    assert jnp.allclose(out, ref, atol=1e-5, rtol=1e-5)

    # --- Test 2: ragged shapes (no pad path, masked edge blocks) ------------
    N2, S2, dm2, h2, dk2 = 2, 5, 48, 3, 16
    x2, w2, b2 = _make_inputs(k2, N2, S2, dm2, h2, dk2, jnp.float32)
    out2 = jax.block_until_ready(prepare_for_mha(x2, w2, b2, h2, dk2))
    ref2 = _reference(x2, w2, b2, h2, dk2)
    assert out2.shape == (N2, S2, h2, dk2)
    assert jnp.allclose(out2, ref2, atol=1e-5, rtol=1e-5)

    # --- Test 3: f32 with forced multi-block reduction (direct accumulation)
    N3, S3, dm3, h3, dk3 = 2, 16, 256, 4, 32
    x3, w3, b3 = _make_inputs(k3, N3, S3, dm3, h3, dk3, jnp.float32)
    out3 = jax.block_until_ready(prepare_for_mha(x3, w3, b3, h3, dk3, tk=128))
    ref3 = _reference(x3, w3, b3, h3, dk3)
    assert out3.shape == (N3, S3, h3, dk3)
    assert jnp.allclose(out3, ref3, atol=1e-4, rtol=1e-4)

    # --- Test 4: bf16 operands, multi-block reduction (scratch-acc path) ----
    x4, w4, b4 = _make_inputs(k4, N3, S3, dm3, h3, dk3, jnp.bfloat16)
    out4 = jax.block_until_ready(prepare_for_mha(x4, w4, b4, h3, dk3, tk=128))
    ref4 = _reference(x4, w4, b4, h3, dk3).astype(jnp.bfloat16)
    assert out4.dtype == jnp.bfloat16 and out4.shape == (N3, S3, h3, dk3)
    assert jnp.allclose(out4.astype(jnp.float32), ref4.astype(jnp.float32),
                        atol=2e-2, rtol=2e-2)

    print("KERNEL_OK")
</pallas_src>

<mosaic_0001>
module attributes {stable_mosaic.version = 11 : i64} {
  func.func @_kernel_direct(%arg0: i32, %arg1: i32, %arg2: i32, %arg3: memref<16x32xf32, #tpu.memory_space<vmem>>, %arg4: memref<32x32xf32, #tpu.memory_space<vmem>>, %arg5: memref<1x32xf32, #tpu.memory_space<vmem>>, %arg6: memref<16x32xf32, #tpu.memory_space<vmem>>) attributes {dimension_semantics = [#tpu.dimension_semantics<parallel>, #tpu.dimension_semantics<parallel>, #tpu.dimension_semantics<arbitrary>], iteration_bounds = array<i64: 1, 1, 1>, scalar_prefetch = 0 : i64, scratch_operands = 0 : i64, tpu.core_type = #tpu.core_type<tc>, window_params = [{transform_indices = @transform_0, window_bounds = array<i64: 16, 32>}, {transform_indices = @transform_1, window_bounds = array<i64: 32, 32>}, {transform_indices = @transform_2, window_bounds = array<i64: 1, 32>}, {transform_indices = @transform_3, window_bounds = array<i64: 16, 32>}]} {
    %c0_i32 = arith.constant 0 : i32
    %0 = arith.cmpi eq, %arg2, %c0_i32 : i32
    %1 = arith.extui %0 : i1 to i32
    %c0_i32_0 = arith.constant 0 : i32
    %2 = arith.cmpi ne, %1, %c0_i32_0 : i32
    scf.if %2 {
      %cst_10 = arith.constant 0.000000e+00 : f32
      %12 = vector.broadcast %cst_10 : f32 to vector<16x32xf32>
      %c0_11 = arith.constant 0 : index
      %c0_12 = arith.constant 0 : index
      %13 = vector.load %arg6[%c0_11, %c0_12] : memref<16x32xf32, #tpu.memory_space<vmem>>, vector<16x32xf32>
      tpu.vector_store %arg6[%c0_11, %c0_12], %12 {strides = array<i32>} : memref<16x32xf32, #tpu.memory_space<vmem>>, vector<16x32xf32>,
    } else {
    }
    %c0 = arith.constant 0 : index
    %c0_1 = arith.constant 0 : index
    %3 = vector.load %arg6[%c0, %c0_1] : memref<16x32xf32, #tpu.memory_space<vmem>>, vector<16x32xf32>
    %c0_2 = arith.constant 0 : index
    %c0_3 = arith.constant 0 : index
    %4 = vector.load %arg3[%c0_2, %c0_3] : memref<16x32xf32, #tpu.memory_space<vmem>>, vector<16x32xf32>
    %c0_4 = arith.constant 0 : index
    %c0_5 = arith.constant 0 : index
    %5 = vector.load %arg4[%c0_4, %c0_5] : memref<32x32xf32, #tpu.memory_space<vmem>>, vector<32x32xf32>
    %cst = arith.constant dense<0.000000e+00> : vector<16x32xf32>
    %6 = tpu.matmul %4, %5, %cst {dimension_numbers = #tpu.dot_dimension_numbers<[1], [0], [0], [1], [0, 0, 1, 1], [], []>} : vector<16x32xf32>, vector<32x32xf32>, vector<16x32xf32> -> vector<16x32xf32>
    %7 = arith.addf %3, %6 : vector<16x32xf32>
    %c0_6 = arith.constant 0 : index
    %c0_7 = arith.constant 0 : index
    %8 = vector.load %arg6[%c0_6, %c0_7] : memref<16x32xf32, #tpu.memory_space<vmem>>, vector<16x32xf32>
    tpu.vector_store %arg6[%c0_6, %c0_7], %7 {strides = array<i32>} : memref<16x32xf32, #tpu.memory_space<vmem>>, vector<16x32xf32>,
    %c0_i32_8 = arith.constant 0 : i32
    %9 = arith.cmpi eq, %arg2, %c0_i32_8 : i32
    %10 = arith.extui %9 : i1 to i32
    %c0_i32_9 = arith.constant 0 : i32
    %11 = arith.cmpi ne, %10, %c0_i32_9 : i32
    scf.if %11 {
      %c0_10 = arith.constant 0 : index
      %c0_11 = arith.constant 0 : index
      %12 = vector.load %arg6[%c0_10, %c0_11] : memref<16x32xf32, #tpu.memory_space<vmem>>, vector<16x32xf32>
      %c0_12 = arith.constant 0 : index
      %c0_13 = arith.constant 0 : index
      %13 = vector.load %arg5[%c0_12, %c0_13] : memref<1x32xf32, #tpu.memory_space<vmem>>, vector<1x32xf32>
      %14 = vector.broadcast %13 : vector<1x32xf32> to vector<16x32xf32>
      %15 = arith.addf %12, %14 : vector<16x32xf32>
      %c0_14 = arith.constant 0 : index
      %c0_15 = arith.constant 0 : index
      %16 = vector.load %arg6[%c0_14, %c0_15] : memref<16x32xf32, #tpu.memory_space<vmem>>, vector<16x32xf32>
      tpu.vector_store %arg6[%c0_14, %c0_15], %15 {strides = array<i32>} : memref<16x32xf32, #tpu.memory_space<vmem>>, vector<16x32xf32>,
    } else {
    }
    return
  }
  func.func @transform_0(%arg0: i32, %arg1: i32, %arg2: i32) -> (i32, i32) {
    %c0_i32 = arith.constant 0 : i32
    return %arg0, %arg2 : i32, i32
  }
  func.func @transform_1(%arg0: i32, %arg1: i32, %arg2: i32) -> (i32, i32) {
    %c0_i32 = arith.constant 0 : i32
    return %arg2, %arg1 : i32, i32
  }
  func.func @transform_2(%arg0: i32, %arg1: i32, %arg2: i32) -> (i32, i32) {
    %c0_i32 = arith.constant 0 : i32
    %c0_i32_0 = arith.constant 0 : i32
    return %c0_i32, %arg1 : i32, i32
  }
  func.func @transform_3(%arg0: i32, %arg1: i32, %arg2: i32) -> (i32, i32) {
    %c0_i32 = arith.constant 0 : i32
    return %arg0, %arg1 : i32, i32
  }
}

</mosaic_0001>

<llo_original>
// kernel: tpu_custom_call.1
$region0: #{tpu_custom_call.1}
  #allocation0 [shape = 'u32[]', space=smem, size = 0x4, offset = 0x4, fixed_abs, tag = 'smem constant byte address 0x4 - core index']
  #allocation1 [shape = 'u32[144,128]{1,0:T(1,128)}', space=vmem, size = 0x12000, scoped, tag = 'internal scratch']
  %s0 = inlined_call_operand.hbm [shape: f32[16,32], index: 0, kind: input, shape index: {}]
  %s1 = inlined_call_operand.hbm [shape: f32[32,32], index: 1, kind: input, shape index: {}]
  %s2 = inlined_call_operand.vmem [shape: f32[1,32], index: 2, kind: input, shape index: {}]
  %s3 = inlined_call_operand.hbm [shape: f32[16,32], index: 3, kind: output, shape index: {}]
  %s4 = sld [smem:[#allocation0]]
  $region38: #{tpu_custom_call.1} parent=0
    _
  %s6 = ssub.s32 1, %s4
  %s7 = scalar_select 0, %s6, %s4
  $region1: #{tpu_custom_call.1} parent=0
    #allocation2 [shape = 'u8[8192]{0}', space=vmem, size = 0x2000, scoped, tag = 'input window, operand 0, single buffered']
    #allocation3 [shape = 's32[1]{0}', space=sflag, size = 0x4, scoped, tag = 'scoped memory for tpu_custom_call.1']
    #allocation4 [shape = 's32[1]{0}', space=sflag, size = 0x4, scoped, tag = 'scoped memory for tpu_custom_call.1']
    #allocation5 [shape = 'u8[16384]{0}', space=vmem, size = 0x4000, scoped, tag = 'input window, operand 1, single buffered']
    #allocation6 [shape = 's32[1]{0}', space=sflag, size = 0x4, scoped, tag = 'scoped memory for tpu_custom_call.1']
    #allocation7 [shape = 'u8[8192]{0}', space=vmem, size = 0x2000, scoped, tag = 'output window, operand 0, single buffered']
    %8 = vsyncpa [#allocation3], 0
    %9 = vsyncpa [#allocation6], 0
    %10 = vsyncpa [#allocation4], 0
    // Predicated region
    $region2: #{tpu_custom_call.1} parent=1 // pred_check
      _
    $region3: #{tpu_custom_call.1} parent=1 // pred_check_branch
      %12 = sbr.rel (0) target = $region5
    $region4: #{tpu_custom_call.1} parent=1 // pred_region
      %s14 = ssub.s32 256, 256
      %15 = vsyncadd [#allocation3], %s14
      %s16 = sshll.u32 [#allocation2], 4
      %s17 = int_to_ptr.vmem [resolvable:$true] %s16
      %22 = dma.hbm_to_vmem [thread:$0]  %s0, 256, %s17, [#allocation3], 128, 128, 8
    $region5: #{tpu_custom_call.1} parent=1 // pred_fallthru
      _
    // Predicated region
    $region6: #{tpu_custom_call.1} parent=1 // pred_check
      _
    $region7: #{tpu_custom_call.1} parent=1 // pred_check_branch
      %24 = sbr.rel (0) target = $region9
    $region8: #{tpu_custom_call.1} parent=1 // pred_region
      %s26 = ssub.s32 512, 512
      %27 = vsyncadd [#allocation6], %s26
      %s28 = sshll.u32 [#allocation5], 4
      %s29 = int_to_ptr.vmem [resolvable:$true] %s28
      %34 = dma.hbm_to_vmem [thread:$0]  %s1, 512, %s29, [#allocation6], 128, 128, 8
    $region9: #{tpu_custom_call.1} parent=1 // pred_fallthru
      _
    // Predicated region
    $region10: #{tpu_custom_call.1} parent=1 // pred_check
      _
    $region11: #{tpu_custom_call.1} parent=1 // pred_check_branch
      %36 = sbr.rel (0) target = $region13
    $region12: #{tpu_custom_call.1} parent=1 // pred_region
      _
    $region13: #{tpu_custom_call.1} parent=1 // pred_fallthru
      _
    // Predicated region
    $region14: #{tpu_custom_call.1} parent=1 // pred_check
      _
    $region15: #{tpu_custom_call.1} parent=1 // pred_check_branch
      %38 = sbr.rel (0) target = $region17
    $region16: #{tpu_custom_call.1} parent=1 // pred_region
      %39 = dma.done [#allocation3], 256
    $region17: #{tpu_custom_call.1} parent=1 // pred_fallthru
      _
    // Predicated region
    $region18: #{tpu_custom_call.1} parent=1 // pred_check
      _
    $region19: #{tpu_custom_call.1} parent=1 // pred_check_branch
      %41 = sbr.rel (0) target = $region21
    $region20: #{tpu_custom_call.1} parent=1 // pred_region
      %42 = dma.done [#allocation6], 512
    $region21: #{tpu_custom_call.1} parent=1 // pred_fallthru
      _
    %p43 = scmp.eq.s32.totalorder 0, 0
    // Predicated region
    $region22: #{tpu_custom_call.1} parent=1 // pred_check
      %p44 = pneg %p43
    $region23: #{tpu_custom_call.1} parent=1 // pred_check_branch
      %46 = sbr.rel (%p44) target = $region25
    $region24: #{tpu_custom_call.1} parent=1 // pred_region
      %vm47 = vcmask 261120
      %48 = vst.msk [vmem:[#allocation7] sm:$0xff] %vm47, 0.0
      %49 = vst.msk [vmem:[#allocation7 + $0x8] sm:$0xff] %vm47, 0.0
    $region25: #{tpu_custom_call.1} parent=1 // pred_fallthru
      _
    %v50 = vld [vmem:[#allocation7] sm:$0xff]
    %v51 = vld [vmem:[#allocation7 + $0x8] sm:$0xff]
    %v52 = vld [vmem:[#allocation2] sm:$0xff]
    %v53 = vld [vmem:[#allocation2 + $0x8] sm:$0xff]
    %v54 = vld [vmem:[#allocation5] sm:$0xff]
    %v55 = vld [vmem:[#allocation5 + $0x8] sm:$0xff]
    %v56 = vld [vmem:[#allocation5 + $0x10] sm:$0xff]
    %v57 = vld [vmem:[#allocation5 + $0x18] sm:$0xff]
    %vm58 = vcmask 261120
    %v60 = vsel %vm58, %v52, 0
    %v63 = vsel %vm58, %v53, 0
    %65 = vmatprep.subr.mxu0 0.0
    %66 = vmatpush1.msra.mxu0 %v54
    %67 = vmatprep.subr.mxu0 0.0
    %68 = vmatpush1.msra.mxu0 %v55
    %69 = vmatprep.subr.mxu0 0.0
    %70 = vmatpush1.msra.mxu0 %v56
    %71 = vmatprep.subr.mxu0 0.0
    %72 = vmatpush1.msra.mxu0 %v57
    %73 = vmatprep.subr.mxu0 0.0
    %74 = vmatpush1.msra.mxu0 0.0
    %75 = vmatprep.subr.mxu0 0.0
    %76 = vmatpush1.msra.mxu0 0.0
    %77 = vmatprep.subr.mxu0 0.0
    %78 = vmatpush1.msra.mxu0 0.0
    %79 = vmatprep.subr.mxu0 0.0
    %80 = vmatpush1.msra.mxu0 0.0
    %81 = vmatprep.subr.mxu0 0.0
    %82 = vmatpush1.msra.mxu0 0.0
    %83 = vmatprep.subr.mxu0 0.0
    %84 = vmatpush1.msra.mxu0 0.0
    %85 = vmatprep.subr.mxu0 0.0
    %86 = vmatpush1.msra.mxu0 0.0
    %87 = vmatprep.subr.mxu0 0.0
    %88 = vmatpush1.msra.mxu0 0.0
    %89 = vmatprep.subr.mxu0 0.0
    %90 = vmatpush1.msra.mxu0 0.0
    %91 = vmatprep.subr.mxu0 0.0
    %92 = vmatpush1.msra.mxu0 0.0
    %93 = vmatprep.subr.mxu0 0.0
    %94 = vmatpush1.msra.mxu0 0.0
    %95 = vmatprep.subr.mxu0 0.0
    %96 = vmatpush1.msra.mxu0 0.0
    %97 = vmatprep.subr.mxu0 0.0
    %98 = vmatpush1.msra.mxu0 0.0
    %99 = vmatprep.subr.mxu0 0.0
    %100 = vmatpush1.msra.mxu0 0.0
    %101 = vmatprep.subr.mxu0 0.0
    %102 = vmatpush1.msra.mxu0 0.0
    %103 = vmatprep.subr.mxu0 0.0
    %104 = vmatpush1.msra.mxu0 0.0
    %105 = vmatprep.subr.mxu0 0.0
    %106 = vmatpush1.msra.mxu0 0.0
    %107 = vmatprep.subr.mxu0 0.0
    %108 = vmatpush1.msra.mxu0 0.0
    %109 = vmatprep.subr.mxu0 0.0
    %110 = vmatpush1.msra.mxu0 0.0
    %111 = vmatprep.subr.mxu0 0.0
    %112 = vmatpush1.msra.mxu0 0.0
    %113 = vmatprep.subr.mxu0 0.0
    %114 = vmatpush1.msra.mxu0 0.0
    %115 = vmatprep.subr.mxu0 0.0
    %116 = vmatpush1.msra.mxu0 0.0
    %117 = vmatprep.subr.mxu0 0.0
    %118 = vmatpush1.msra.mxu0 0.0
    %119 = vmatprep.subr.mxu0 0.0
    %120 = vmatpush1.msra.mxu0 0.0
    %121 = vmatprep.subr.mxu0 0.0
    %122 = vmatpush1.msra.mxu0 0.0
    %123 = vmatprep.subr.mxu0 0.0
    %124 = vmatpush1.msra.mxu0 0.0
    %125 = vmatprep.subr.mxu0 0.0
    %126 = vmatpush1.msra.mxu0 0.0
    %127 = vmatprep.subr.mxu0 0.0
    %128 = vmatpush1.msra.mxu0 0.0
    %129 = vmatprep.mubr.f32.mxu0 0.0
    %130 = vmatmul.mubr.f32.gmra.mrb[0].mxu0 %v60
    %v131 = vpop.f32.mrb[0].mxu0
    %v132 = vadd.f32 0.0, %v131
    %v133 = vpop.f32.mrb[0].mxu0
    %134 = vmatprep.mubr.f32.mxu0 0.0
    %135 = vmatmul.mubr.f32.gmra.mrb[0].mxu0 %v63
    %v136 = vpop.f32.mrb[0].mxu0
    %v137 = vadd.f32 0.0, %v136
    %v138 = vpop.f32.mrb[0].mxu0
    %139 = vdwg.mxu0
    %v140 = vadd.f32 %v50, %v132
    %v141 = vadd.f32 %v51, %v137
    %142 = vst.msk [vmem:[#allocation7] sm:$0xff] %vm58, %v140
    %143 = vst.msk [vmem:[#allocation7 + $0x8] sm:$0xff] %vm58, %v141
    // Predicated region
    $region26: #{tpu_custom_call.1} parent=1 // pred_check
      %p144 = pneg %p43
    $region27: #{tpu_custom_call.1} parent=1 // pred_check_branch
      %146 = sbr.rel (%p144) target = $region29
    $region28: #{tpu_custom_call.1} parent=1 // pred_region
      %v147 = vld [vmem:[#allocation7] sm:$0xff]
      %v148 = vld [vmem:[#allocation7 + $0x8] sm:$0xff]
      %v149 = vld [vmem:[%s2] sm:$0x1]
      %v151 = vlaneseq
      %v152 = vshrl.u32 %v151, 7
      %v153 = vsub.s32 0, %v152
      %v154 = vrot.slane %v149, %v153
      %v156 = vadd.f32 %v147, %v154
      %v157 = vadd.f32 %v148, %v154
      %158 = vst.msk [vmem:[#allocation7] sm:$0xff] %vm58, %v156
      %159 = vst.msk [vmem:[#allocation7 + $0x8] sm:$0xff] %vm58, %v157
    $region29: #{tpu_custom_call.1} parent=1 // pred_fallthru
      _
    // Predicated region
    $region30: #{tpu_custom_call.1} parent=1 // pred_check
      _
    $region31: #{tpu_custom_call.1} parent=1 // pred_check_branch
      %161 = sbr.rel (0) target = $region33
    $region32: #{tpu_custom_call.1} parent=1 // pred_region
      %s163 = ssub.s32 256, 256
      %164 = vsyncadd [#allocation4], %s163
      %s165 = sshll.u32 [#allocation7], 4
      %s166 = int_to_ptr.vmem [resolvable:$true] %s165
      %171 = dma.vmem_to_hbm [thread:$0]  %s166, 256, %s3, [#allocation4], 128, 128, 8
    $region33: #{tpu_custom_call.1} parent=1 // pred_fallthru
      _
    // Predicated region
    $region34: #{tpu_custom_call.1} parent=1 // pred_check
      _
    $region35: #{tpu_custom_call.1} parent=1 // pred_check_branch
      %173 = sbr.rel (0) target = $region37
    $region36: #{tpu_custom_call.1} parent=1 // pred_region
      %174 = dma.done [#allocation4], 256
    $region37: #{tpu_custom_call.1} parent=1 // pred_fallthru
      _
    %175 = vsyncpa [#allocation3], 1
    %176 = vsyncpa [#allocation6], 1
    %177 = vsyncpa [#allocation4], 1

</llo_original>
